<compile_context>
chip_gen: v7x
topology: tpu7x:2x2x1
jax: 0.10.0
libtpu: 0.0.40
codegen_flags: <defaults>
</compile_context>

<pallas_src>
import functools

import jax
import jax.numpy as jnp
from jax.experimental import pallas as pl
from jax.experimental.pallas import tpu as pltpu


def _make_kernel(TH, W, Cin):
    K = 9 * Cin

    def kernel(x_ref, w_ref, b_ref, a_ref, o_ref):
        # x_ref: (1, H+2, W+2, Cin)  full zero-padded image, compute dtype,
        #                            VMEM-resident across H tiles
        # w_ref: (9*Cin, Cout)       im2col weight (rows: kh-major, kw, ci)
        # b_ref: (1, Cout) f32       bias
        # a_ref: (1, Cout) f32       PReLU slope expanded to conv-out channels
        # o_ref: (1, TH*W, Cout)     output tile, spatial flattened (h*W + w)
        t = pl.program_id(1)
        h0 = t * TH
        if TH % 8 == 0:
            h0 = pl.multiple_of(h0, 8)

        # im2col in the matmul dtype: 3 sublane-aligned row slabs (one per kh),
        # kw windows are static slices of the slab (XLU shifts, not masked vld).
        pieces = []
        for kh in range(3):
            slab = x_ref[0, pl.ds(h0 + kh, TH), :, :]      # (TH, W+2, Cin)
            for kw in range(3):
                pieces.append(slab[:, kw:kw + W, :])       # (TH, W, Cin)
        patches = jnp.concatenate(pieces, axis=-1)         # (TH, W, 9*Cin)
        patches = patches.reshape(TH * W, K)               # leading-dim merge only

        # Single MXU matmul with K = 9*Cin, f32 accumulation.
        acc = jnp.dot(patches, w_ref[...],
                      preferred_element_type=jnp.float32)  # (TH*W, Cout) f32

        # Fused f32 epilogue: bias + PReLU (slope constant within each r*r
        # channel group, so applying it before PixelShuffle matches PyTorch).
        acc = acc + b_ref[...]
        out = jnp.where(acc >= 0, acc, a_ref[...] * acc)
        o_ref[0] = out.astype(o_ref.dtype)

    return kernel


def _vmem_limit_bytes():
    """Generation-aware scoped-VMEM limit: ~48 MiB on v7x (64 MiB/TC),
    ~100 MiB on v5e/v6e (128 MiB)."""
    cap = None
    try:
        cap = getattr(pltpu.get_tpu_info(), "vmem_capacity_bytes", None)
    except Exception:
        cap = None
    if not cap:
        cap = 64 << 20  # conservative fallback
    return int(min(max(cap - (16 << 20), 32 << 20), 100 << 20))


def _pick_tile_h(N, H, W, Cin, Cout, cbytes, slab_bytes, vmem_limit_bytes):
    """Largest H-tile dividing H whose full working set fits the VMEM budget,
    with (TH*W) % 8 == 0 enforced and >= 4 total grid steps preferred."""
    def rup(x, m):
        return -(-x // m) * m

    cin_l = rup(Cin, 128)          # lane padding of the input channel axis
    cout_l = rup(Cout, 128)
    k_l = rup(9 * Cin, 128)
    wp = rup(W + 2, 8)

    # Resident across H tiles: padded input (double-buffered over the batch
    # axis), im2col weight, bias + alpha.
    resident = 2 * (H + 2) * wp * cin_l * cbytes
    resident += rup(9 * Cin, 8) * cout_l * cbytes
    resident += 2 * 8 * cout_l * 4

    budget = int(vmem_limit_bytes * 0.8) - resident

    def per_tile(th):
        m8 = rup(th * W, 8)
        patches = m8 * k_l * cbytes                  # im2col matmul operand
        slabs = 3 * th * wp * cin_l * cbytes         # kh row slabs / windows
        acc = m8 * cout_l * 4                        # f32 accumulator + epilogue
        out = 2 * m8 * cout_l * slab_bytes           # double-buffered output
        return patches + slabs + acc + out

    best, best_key = None, None
    for th in range(1, H + 1):
        if H % th:
            continue
        if (th * W) % 8 and th * W != H * W:
            continue                                  # (8,128) rule on out block
        if per_tile(th) > budget:
            continue
        key = ((th * W) % 8 == 0,                     # lane/sublane-friendly
               N * (H // th) >= 4,                    # >= 2 steps per TC (v7x)
               th)                                    # then: as large as fits
        if best is None or key > best_key:
            best, best_key = th, key
    if best is None:
        best = 1 if W % 8 == 0 else H
    return best


@functools.partial(jax.jit, static_argnames=("scale_factor", "compute_dtype",
                                             "slab_dtype", "tile_h"))
def upsampling_block(x_nchw, weight_oihw, bias, alpha, scale_factor,
                     compute_dtype=jnp.bfloat16, slab_dtype=None, tile_h=None):
    """Forward pass of UpsamplingBlock.

    x_nchw:      (N, Cin, H, W)          float32
    weight_oihw: (Cin*r^2, Cin, 3, 3)    float32 (PyTorch conv layout)
    bias:        (Cin*r^2,)              float32
    alpha:       (Cin,)                  float32 (PReLU per-channel slope)
    compute_dtype: MXU operand dtype (bf16 default; f32 = exact mode)
    slab_dtype:  dtype of the (N, H*W, Cout) activation slab that the XLA-side
                 PixelShuffle reads (None -> x dtype; bf16 halves that HBM pass
                 at bf16-rounding precision)
    returns:     (N, Cin, H*r, W*r)      x dtype (NCHW, matching PyTorch)
    """
    N, Cin, H, W = x_nchw.shape
    r = scale_factor
    Cout = weight_oihw.shape[0]
    assert Cout == Cin * r * r
    out_dtype = x_nchw.dtype
    slab_dt = out_dtype if slab_dtype is None else slab_dtype

    # NCHW -> NHWC, zero-pad spatially (padding=1). XLA fuses transpose+pad+cast.
    x = jnp.transpose(x_nchw, (0, 2, 3, 1))
    x_pad = jnp.pad(x, ((0, 0), (1, 1), (1, 1), (0, 0))).astype(compute_dtype)

    # OIHW -> im2col weight: row (kh*3 + kw)*Cin + ci, column co.
    w2 = jnp.transpose(weight_oihw, (2, 3, 1, 0)).reshape(9 * Cin, Cout)
    w2 = w2.astype(compute_dtype)

    bias2 = bias.reshape(1, Cout).astype(jnp.float32)
    # PReLU slope alpha[c] applies to conv-out channels c*r^2 .. c*r^2 + r^2 - 1.
    alpha2 = jnp.repeat(alpha, r * r).reshape(1, Cout).astype(jnp.float32)

    vmem_limit = _vmem_limit_bytes()
    cbytes = jnp.dtype(compute_dtype).itemsize
    sbytes = jnp.dtype(slab_dt).itemsize
    if tile_h is None:
        tile_h = _pick_tile_h(N, H, W, Cin, Cout, cbytes, sbytes, vmem_limit)
    TH = tile_h
    assert H % TH == 0
    assert (TH * W) % 8 == 0 or TH * W == H * W, (
        "output block second-minor dim (TH*W) must be a multiple of 8")
    n_h = H // TH

    kernel = _make_kernel(TH, W, Cin)

    conv_flat = pl.pallas_call(
        kernel,
        out_shape=jax.ShapeDtypeStruct((N, H * W, Cout), slab_dt),
        grid=(N, n_h),
        in_specs=[
            # Full padded image per batch element; block index is constant in t,
            # so it stays VMEM-resident across the H-tile axis.
            pl.BlockSpec((1, H + 2, W + 2, Cin), lambda n, t: (n, 0, 0, 0)),
            pl.BlockSpec((9 * Cin, Cout), lambda n, t: (0, 0)),
            pl.BlockSpec((1, Cout), lambda n, t: (0, 0)),
            pl.BlockSpec((1, Cout), lambda n, t: (0, 0)),
        ],
        out_specs=pl.BlockSpec((1, TH * W, Cout), lambda n, t: (n, t, 0)),
        compiler_params=pltpu.CompilerParams(
            dimension_semantics=("parallel", "parallel"),
            vmem_limit_bytes=vmem_limit,
        ),
    )(x_pad, w2, bias2, alpha2)

    # PixelShuffle: out[n, c, h*r+i, w*r+j] = conv[n, h, w, c*r^2 + i*r + j]
    conv = conv_flat.reshape(N, H, W, Cin, r, r)
    y = jnp.transpose(conv, (0, 1, 4, 2, 5, 3)).reshape(N, H * r, W * r, Cin)
    return jnp.transpose(y, (0, 3, 1, 2)).astype(out_dtype)   # NHWC -> NCHW


def _reference(x_nchw, weight_oihw, bias, alpha, r):
    # Pure-JAX reference (XLA conv + pixel shuffle + PReLU) for verification.
    conv = jax.lax.conv_general_dilated(
        x_nchw, weight_oihw, window_strides=(1, 1), padding=((1, 1), (1, 1)),
        dimension_numbers=("NCHW", "OIHW", "NCHW"))
    conv = conv + bias[None, :, None, None]
    N, C, H, W = conv.shape
    Cin = C // (r * r)
    y = conv.reshape(N, Cin, r, r, H, W)
    y = jnp.transpose(y, (0, 1, 4, 2, 5, 3)).reshape(N, Cin, H * r, W * r)
    a = alpha[None, :, None, None]
    return jnp.where(y >= 0, y, a * y)


if __name__ == "__main__":
    key = jax.random.PRNGKey(0)
    N, Cin, H, W = 2, 4, 16, 16
    scale = 2
    Cout = Cin * scale * scale

    kx, kw, kb, ka = jax.random.split(key, 4)
    x = jax.random.normal(kx, (N, Cin, H, W), dtype=jnp.float32)
    weight = jax.random.normal(kw, (Cout, Cin, 3, 3), dtype=jnp.float32) * 0.1
    bias = jax.random.normal(kb, (Cout,), dtype=jnp.float32) * 0.01
    # PyTorch PReLU init is 0.25; keep it deterministic but non-trivial.
    alpha = jnp.full((Cin,), 0.25, dtype=jnp.float32) + 0.01 * jnp.arange(Cin, dtype=jnp.float32)

    ref = _reference(x, weight, bias, alpha, scale)

    # Exact mode: f32 MXU operands, tight tolerance vs the XLA conv reference.
    out_f32 = upsampling_block(x, weight, bias, alpha, scale_factor=scale,
                               compute_dtype=jnp.float32)
    out_f32 = jax.block_until_ready(out_f32)
    assert out_f32.shape == (N, Cin, H * scale, W * scale), out_f32.shape
    assert jnp.allclose(out_f32, ref, atol=1e-4, rtol=1e-4), \
        float(jnp.max(jnp.abs(out_f32 - ref)))

    # Default perf mode: bf16 MXU operands, f32 accumulation, f32 slab.
    out = upsampling_block(x, weight, bias, alpha, scale_factor=scale)
    out = jax.block_until_ready(out)
    assert out.shape == (N, Cin, H * scale, W * scale), out.shape
    assert jnp.allclose(out, ref, atol=5e-2, rtol=5e-2), \
        float(jnp.max(jnp.abs(out - ref)))

    # Max-bandwidth mode: bf16 activation slab (halves the PixelShuffle HBM pass).
    out_bf = upsampling_block(x, weight, bias, alpha, scale_factor=scale,
                              slab_dtype=jnp.bfloat16)
    out_bf = jax.block_until_ready(out_bf)
    assert jnp.allclose(out_bf, ref, atol=5e-2, rtol=5e-2), \
        float(jnp.max(jnp.abs(out_bf - ref)))

    print("KERNEL_OK")
</pallas_src>

<mosaic_0001>
module attributes {stable_mosaic.version = 11 : i64} {
  func.func @kernel(%arg0: i32, %arg1: i32, %arg2: memref<1x18x18x4xf32, #tpu.memory_space<vmem>>, %arg3: memref<36x16xf32, #tpu.memory_space<vmem>>, %arg4: memref<1x16xf32, #tpu.memory_space<vmem>>, %arg5: memref<1x16xf32, #tpu.memory_space<vmem>>, %arg6: memref<1x128x16xf32, #tpu.memory_space<vmem>>) attributes {dimension_semantics = [#tpu.dimension_semantics<parallel>, #tpu.dimension_semantics<parallel>], iteration_bounds = array<i64: 2, 2>, scalar_prefetch = 0 : i64, scratch_operands = 0 : i64, tpu.core_type = #tpu.core_type<tc>, window_params = [{transform_indices = @transform_0, window_bounds = array<i64: 1, 18, 18, 4>}, {pipeline_mode = #tpu.pipeline_mode<synchronous>, transform_indices = @transform_1, window_bounds = array<i64: 36, 16>}, {pipeline_mode = #tpu.pipeline_mode<synchronous>, transform_indices = @transform_2, window_bounds = array<i64: 1, 16>}, {pipeline_mode = #tpu.pipeline_mode<synchronous>, transform_indices = @transform_3, window_bounds = array<i64: 1, 16>}, {transform_indices = @transform_4, window_bounds = array<i64: 1, 128, 16>}]} {
    %c8_i32 = arith.constant 8 : i32
    %0 = arith.muli %arg1, %c8_i32 : i32
    %1 = tpu.assume_multiple %0, 8 : i32
    %c0_i32 = arith.constant 0 : i32
    %2 = arith.addi %1, %c0_i32 : i32
    %c0 = arith.constant 0 : index
    %3 = arith.index_cast %2 : i32 to index
    %c0_0 = arith.constant 0 : index
    %c0_1 = arith.constant 0 : index
    %4 = vector.load %arg2[%c0, %3, %c0_0, %c0_1] : memref<1x18x18x4xf32, #tpu.memory_space<vmem>>, vector<1x8x18x4xf32>
    %5 = vector.shape_cast %4 : vector<1x8x18x4xf32> to vector<8x18x4xf32>
    %6 = vector.extract_strided_slice %5 {offsets = [0, 0, 0], sizes = [8, 16, 4], strides = [1, 1, 1]} : vector<8x18x4xf32> to vector<8x16x4xf32>
    %7 = vector.extract_strided_slice %5 {offsets = [0, 1, 0], sizes = [8, 16, 4], strides = [1, 1, 1]} : vector<8x18x4xf32> to vector<8x16x4xf32>
    %8 = vector.extract_strided_slice %5 {offsets = [0, 2, 0], sizes = [8, 16, 4], strides = [1, 1, 1]} : vector<8x18x4xf32> to vector<8x16x4xf32>
    %c1_i32 = arith.constant 1 : i32
    %9 = arith.addi %1, %c1_i32 : i32
    %c0_2 = arith.constant 0 : index
    %10 = arith.index_cast %9 : i32 to index
    %c0_3 = arith.constant 0 : index
    %c0_4 = arith.constant 0 : index
    %11 = vector.load %arg2[%c0_2, %10, %c0_3, %c0_4] : memref<1x18x18x4xf32, #tpu.memory_space<vmem>>, vector<1x8x18x4xf32>
    %12 = vector.shape_cast %11 : vector<1x8x18x4xf32> to vector<8x18x4xf32>
    %13 = vector.extract_strided_slice %12 {offsets = [0, 0, 0], sizes = [8, 16, 4], strides = [1, 1, 1]} : vector<8x18x4xf32> to vector<8x16x4xf32>
    %14 = vector.extract_strided_slice %12 {offsets = [0, 1, 0], sizes = [8, 16, 4], strides = [1, 1, 1]} : vector<8x18x4xf32> to vector<8x16x4xf32>
    %15 = vector.extract_strided_slice %12 {offsets = [0, 2, 0], sizes = [8, 16, 4], strides = [1, 1, 1]} : vector<8x18x4xf32> to vector<8x16x4xf32>
    %c2_i32 = arith.constant 2 : i32
    %16 = arith.addi %1, %c2_i32 : i32
    %c0_5 = arith.constant 0 : index
    %17 = arith.index_cast %16 : i32 to index
    %c0_6 = arith.constant 0 : index
    %c0_7 = arith.constant 0 : index
    %18 = vector.load %arg2[%c0_5, %17, %c0_6, %c0_7] : memref<1x18x18x4xf32, #tpu.memory_space<vmem>>, vector<1x8x18x4xf32>
    %19 = vector.shape_cast %18 : vector<1x8x18x4xf32> to vector<8x18x4xf32>
    %20 = vector.extract_strided_slice %19 {offsets = [0, 0, 0], sizes = [8, 16, 4], strides = [1, 1, 1]} : vector<8x18x4xf32> to vector<8x16x4xf32>
    %21 = vector.extract_strided_slice %19 {offsets = [0, 1, 0], sizes = [8, 16, 4], strides = [1, 1, 1]} : vector<8x18x4xf32> to vector<8x16x4xf32>
    %22 = vector.extract_strided_slice %19 {offsets = [0, 2, 0], sizes = [8, 16, 4], strides = [1, 1, 1]} : vector<8x18x4xf32> to vector<8x16x4xf32>
    %23 = tpu.concatenate %6, %7, %8, %13, %14, %15, %20, %21, %22 in 2 : vector<8x16x4xf32>, vector<8x16x4xf32>, vector<8x16x4xf32>, vector<8x16x4xf32>, vector<8x16x4xf32>, vector<8x16x4xf32>, vector<8x16x4xf32>, vector<8x16x4xf32>, vector<8x16x4xf32> -> vector<8x16x36xf32>
    %24 = vector.shape_cast %23 : vector<8x16x36xf32> to vector<128x36xf32>
    %c0_8 = arith.constant 0 : index
    %c0_9 = arith.constant 0 : index
    %25 = vector.load %arg3[%c0_8, %c0_9] : memref<36x16xf32, #tpu.memory_space<vmem>>, vector<36x16xf32>
    %cst = arith.constant dense<0.000000e+00> : vector<128x16xf32>
    %26 = tpu.matmul %24, %25, %cst {dimension_numbers = #tpu.dot_dimension_numbers<[1], [0], [0], [1], [0, 0, 1, 1], [], []>} : vector<128x36xf32>, vector<36x16xf32>, vector<128x16xf32> -> vector<128x16xf32>
    %c0_10 = arith.constant 0 : index
    %c0_11 = arith.constant 0 : index
    %27 = vector.load %arg4[%c0_10, %c0_11] : memref<1x16xf32, #tpu.memory_space<vmem>>, vector<1x16xf32>
    %28 = vector.broadcast %27 : vector<1x16xf32> to vector<128x16xf32>
    %29 = arith.addf %26, %28 : vector<128x16xf32>
    %cst_12 = arith.constant 0.000000e+00 : f32
    %30 = vector.broadcast %cst_12 : f32 to vector<128x16xf32>
    %31 = arith.cmpf oge, %29, %30 : vector<128x16xf32>
    %c0_13 = arith.constant 0 : index
    %c0_14 = arith.constant 0 : index
    %32 = vector.load %arg5[%c0_13, %c0_14] : memref<1x16xf32, #tpu.memory_space<vmem>>, vector<1x16xf32>
    %33 = vector.broadcast %32 : vector<1x16xf32> to vector<128x16xf32>
    %34 = arith.mulf %33, %29 : vector<128x16xf32>
    %35 = arith.select %31, %29, %34 : vector<128x16xi1>, vector<128x16xf32>
    %c0_15 = arith.constant 0 : index
    %c0_16 = arith.constant 0 : index
    %c0_17 = arith.constant 0 : index
    %36 = vector.load %arg6[%c0_15, %c0_16, %c0_17] : memref<1x128x16xf32, #tpu.memory_space<vmem>>, vector<1x128x16xf32>
    %37 = vector.shape_cast %36 : vector<1x128x16xf32> to vector<128x16xf32>
    %38 = vector.shape_cast %35 : vector<128x16xf32> to vector<1x128x16xf32>
    tpu.vector_store %arg6[%c0_15, %c0_16, %c0_17], %38 {strides = array<i32>} : memref<1x128x16xf32, #tpu.memory_space<vmem>>, vector<1x128x16xf32>,
    return
  }
  func.func @transform_0(%arg0: i32, %arg1: i32) -> (i32, i32, i32, i32) {
    %c0_i32 = arith.constant 0 : i32
    %c0_i32_0 = arith.constant 0 : i32
    %c0_i32_1 = arith.constant 0 : i32
    %c0_i32_2 = arith.constant 0 : i32
    return %arg0, %c0_i32, %c0_i32_0, %c0_i32_1 : i32, i32, i32, i32
  }
  func.func @transform_1(%arg0: i32, %arg1: i32) -> (i32, i32) {
    %c0_i32 = arith.constant 0 : i32
    %c0_i32_0 = arith.constant 0 : i32
    %c0_i32_1 = arith.constant 0 : i32
    return %c0_i32, %c0_i32_0 : i32, i32
  }
  func.func @transform_2(%arg0: i32, %arg1: i32) -> (i32, i32) {
    %c0_i32 = arith.constant 0 : i32
    %c0_i32_0 = arith.constant 0 : i32
    %c0_i32_1 = arith.constant 0 : i32
    return %c0_i32, %c0_i32_0 : i32, i32
  }
  func.func @transform_3(%arg0: i32, %arg1: i32) -> (i32, i32) {
    %c0_i32 = arith.constant 0 : i32
    %c0_i32_0 = arith.constant 0 : i32
    %c0_i32_1 = arith.constant 0 : i32
    return %c0_i32, %c0_i32_0 : i32, i32
  }
  func.func @transform_4(%arg0: i32, %arg1: i32) -> (i32, i32, i32) {
    %c0_i32 = arith.constant 0 : i32
    %c0_i32_0 = arith.constant 0 : i32
    return %arg0, %arg1, %c0_i32 : i32, i32, i32
  }
}

</mosaic_0001>

<llo_original>
// kernel: upsampling_block.1
$region0: #{upsampling_block.1}
  #allocation0 [shape = 'u32[]', space=smem, size = 0x4, offset = 0x4, fixed_abs, tag = 'smem constant byte address 0x4 - core index']
  #allocation1 [shape = 'u32[144,128]{1,0:T(1,128)}', space=vmem, size = 0x12000, scoped, tag = 'internal scratch']
  %s0 = inlined_call_operand.vmem [shape: f32[2,18,18,4], index: 0, kind: input, shape index: {}]
  %s1 = inlined_call_operand.vmem [shape: f32[36,16], index: 1, kind: input, shape index: {}]
  %s2 = inlined_call_operand.vmem [shape: f32[1,16], index: 2, kind: input, shape index: {}]
  %s3 = inlined_call_operand.vmem [shape: f32[1,16], index: 3, kind: input, shape index: {}]
  %s4 = inlined_call_operand.vmem [shape: f32[2,256,16], index: 4, kind: output, shape index: {}]
  %s5 = sld [smem:[#allocation0]]
  $region49: #{upsampling_block.1} parent=0
    _
  %s7 = ssub.s32 1, %s5
  %s8 = scalar_select 0, %s7, %s5
  loop: start=0, step=1, limit=6
  $region2: #{upsampling_block.1} parent=0 // loop_pre_header
    _
  $region3: #{upsampling_block.1} parent=0 // loop_header
    %s10 = sphi 0, %s14
    %p11 = scmp.ge.s32.totalorder %s10, 6
    %s17 = sphi 0, %s29
    %s18 = sphi 0, %s25
    %s19 = sphi 0, %s17
    %s20 = sphi 0, %s18
    %s21 = sphi 0, %s19
    %s22 = sphi 0, %s20
    %s32 = sphi 0, %s34
    %s35 = sphi 0, %s32
    %s36 = sphi 0, %s35
    %s52 = sphi 0, %s36
    %s56 = sphi 0, %s56
    %s58 = sphi 0, %s56
    %s59 = sphi 0, %s58
    %s73 = sphi 0, %s59
    %s77 = sphi 0, %s77
    %s79 = sphi 0, %s77
    %s80 = sphi 0, %s79
    %s94 = sphi 0, %s80
    %s98 = sphi 0, %s98
    %s100 = sphi 0, %s98
    %s101 = sphi 0, %s100
    %s115 = sphi 0, %s101
    %s123 = sphi 0, %s125
    %s126 = sphi 0, %s123
    %s127 = sphi 0, %s126
    %s143 = sphi 0, %s127
  $region4: #{upsampling_block.1} parent=0 // loop_header_branch
    %13 = sbr.rel (%p11) target = $region8
  $region5: #{upsampling_block.1} parent=0 // loop_body
    %s15 = ssub.s32 %s10, 1
    %s16 = ssub.s32 %s10, 2
    %s23 = sadd.s32 1, %s18
    %p24 = scmp.ge.s32.totalorder %s23, 2
    %s25 = scalar_select %p24, 0, %s23
    %s26 = sadd.s32 1, %s17
    %s27 = scalar_select %p24, %s26, %s17
    %p28 = scmp.ge.s32.totalorder %s27, 2
    %s29 = scalar_select %p28, 0, %s27
    %s30 = ssub.s32 %s17, %s29
    %p31 = scmp.eq.s32.totalorder %s30, 0
    %s33 = sadd.s32 %s32, 1
    %s34 = scalar_select %p31, %s32, %s33
    %p37 = pneg %p31
    %p38 = scmp.eq.s32.totalorder %s10, 3
    %p39 = por %p37, %p38
    %p40 = scmp.ne.s32.totalorder %s32, %s35
    %p41 = scmp.eq.s32.totalorder %s10, 0
    %p42 = por %p40, %p41
    %p43 = scmp.ne.s32.totalorder %s32, %s35
    %p44 = scmp.eq.s32.totalorder %s15, 3
    %p45 = por %p43, %p44
    %p46 = scmp.ne.s32.totalorder %s35, %s36
    %p47 = scmp.eq.s32.totalorder %s15, 0
    %p48 = por %p46, %p47
    %p49 = scmp.ne.s32.totalorder %s35, %s36
    %p50 = scmp.eq.s32.totalorder %s16, 3
    %p51 = por %p49, %p50
    %p53 = scmp.ne.s32.totalorder %s36, %s52
    %p54 = scmp.eq.s32.totalorder %s16, 0
    %p55 = por %p53, %p54
    %s57 = sadd.s32 %s56, 1
    %p60 = scmp.eq.s32.totalorder %s10, 3
    %p61 = scmp.ne.s32.totalorder %s56, %s58
    %p62 = scmp.eq.s32.totalorder %s10, 0
    %p63 = por %p61, %p62
    %p64 = scmp.ne.s32.totalorder %s56, %s58
    %p65 = scmp.eq.s32.totalorder %s15, 3
    %p66 = por %p64, %p65
    %p67 = scmp.ne.s32.totalorder %s58, %s59
    %p68 = scmp.eq.s32.totalorder %s15, 0
    %p69 = por %p67, %p68
    %p70 = scmp.ne.s32.totalorder %s58, %s59
    %p71 = scmp.eq.s32.totalorder %s16, 3
    %p72 = por %p70, %p71
    %p74 = scmp.ne.s32.totalorder %s59, %s73
    %p75 = scmp.eq.s32.totalorder %s16, 0
    %p76 = por %p74, %p75
    %s78 = sadd.s32 %s77, 1
    %p81 = scmp.eq.s32.totalorder %s10, 3
    %p82 = scmp.ne.s32.totalorder %s77, %s79
    %p83 = scmp.eq.s32.totalorder %s10, 0
    %p84 = por %p82, %p83
    %p85 = scmp.ne.s32.totalorder %s77, %s79
    %p86 = scmp.eq.s32.totalorder %s15, 3
    %p87 = por %p85, %p86
    %p88 = scmp.ne.s32.totalorder %s79, %s80
    %p89 = scmp.eq.s32.totalorder %s15, 0
    %p90 = por %p88, %p89
    %p91 = scmp.ne.s32.totalorder %s79, %s80
    %p92 = scmp.eq.s32.totalorder %s16, 3
    %p93 = por %p91, %p92
    %p95 = scmp.ne.s32.totalorder %s80, %s94
    %p96 = scmp.eq.s32.totalorder %s16, 0
    %p97 = por %p95, %p96
    %s99 = sadd.s32 %s98, 1
    %p102 = scmp.eq.s32.totalorder %s10, 3
    %p103 = scmp.ne.s32.totalorder %s98, %s100
    %p104 = scmp.eq.s32.totalorder %s10, 0
    %p105 = por %p103, %p104
    %p106 = scmp.ne.s32.totalorder %s98, %s100
    %p107 = scmp.eq.s32.totalorder %s15, 3
    %p108 = por %p106, %p107
    %p109 = scmp.ne.s32.totalorder %s100, %s101
    %p110 = scmp.eq.s32.totalorder %s15, 0
    %p111 = por %p109, %p110
    %p112 = scmp.ne.s32.totalorder %s100, %s101
    %p113 = scmp.eq.s32.totalorder %s16, 3
    %p114 = por %p112, %p113
    %p116 = scmp.ne.s32.totalorder %s101, %s115
    %p117 = scmp.eq.s32.totalorder %s16, 0
    %p118 = por %p116, %p117
    %s119 = ssub.s32 %s17, %s29
    %s120 = ssub.s32 %s18, %s25
    %s121 = sor.u32 %s119, %s120
    %p122 = scmp.eq.s32.totalorder %s121, 0
    %s124 = sadd.s32 %s123, 1
    %s125 = scalar_select %p122, %s123, %s124
    %p128 = pneg %p122
    %p129 = scmp.eq.s32.totalorder %s10, 3
    %p130 = por %p128, %p129
    %p131 = scmp.ne.s32.totalorder %s123, %s126
    %p132 = scmp.eq.s32.totalorder %s10, 0
    %p133 = por %p131, %p132
    %p134 = scmp.ne.s32.totalorder %s123, %s126
    %p135 = scmp.eq.s32.totalorder %s15, 3
    %p136 = por %p134, %p135
    %p137 = scmp.ne.s32.totalorder %s126, %s127
    %p138 = scmp.eq.s32.totalorder %s15, 0
    %p139 = por %p137, %p138
    %p140 = scmp.ne.s32.totalorder %s126, %s127
    %p141 = scmp.eq.s32.totalorder %s16, 3
    %p142 = por %p140, %p141
    %p144 = scmp.ne.s32.totalorder %s127, %s143
    %p145 = scmp.eq.s32.totalorder %s16, 0
    %p146 = por %p144, %p145
    %p147 = scmp.le.s32.totalorder 1, %s10
    %p148 = scmp.lt.s32.totalorder %s10, 5
    %p149 = pnand %p147, %p148
    %p150 = pneg %p149
    // Predicated region
    $region9: #{upsampling_block.1} parent=5 // pred_check
      _
    $region10: #{upsampling_block.1} parent=5 // pred_check_branch
      %152 = sbr.rel (%p149) target = $region12
    $region11: #{upsampling_block.1} parent=5 // pred_region
      %s153 = ssub.s32 %s10, 1
      // Predicated region
      $region13: #{upsampling_block.1} parent=11 // pred_check
        %p154 = pneg %p69
      $region14: #{upsampling_block.1} parent=11 // pred_check_branch
        %156 = sbr.rel (%p154) target = $region16
      $region15: #{upsampling_block.1} parent=11 // pred_region
        _
      $region16: #{upsampling_block.1} parent=11 // pred_fallthru
        _
      // Predicated region
      $region17: #{upsampling_block.1} parent=11 // pred_check
        %p157 = pneg %p90
      $region18: #{upsampling_block.1} parent=11 // pred_check_branch
        %159 = sbr.rel (%p157) target = $region20
      $region19: #{upsampling_block.1} parent=11 // pred_region
        _
      $region20: #{upsampling_block.1} parent=11 // pred_fallthru
        _
      // Predicated region
      $region21: #{upsampling_block.1} parent=11 // pred_check
        %p160 = pneg %p111
      $region22: #{upsampling_block.1} parent=11 // pred_check_branch
        %162 = sbr.rel (%p160) target = $region24
      $region23: #{upsampling_block.1} parent=11 // pred_region
        _
      $region24: #{upsampling_block.1} parent=11 // pred_fallthru
        _
    $region12: #{upsampling_block.1} parent=5 // pred_fallthru
      _
    %p163 = scmp.lt.s32.totalorder %s10, 4
    // Predicated region
    $region25: #{upsampling_block.1} parent=5 // pred_check
      %p164 = pneg %p163
    $region26: #{upsampling_block.1} parent=5 // pred_check_branch
      %166 = sbr.rel (%p164) target = $region28
    $region27: #{upsampling_block.1} parent=5 // pred_region
      // Predicated region
      $region29: #{upsampling_block.1} parent=27 // pred_check
        %p167 = pneg %p42
      $region30: #{upsampling_block.1} parent=27 // pred_check_branch
        %169 = sbr.rel (%p167) target = $region32
      $region31: #{upsampling_block.1} parent=27 // pred_region
        %p170 = scmp.lt.s32.totalorder %s17, 1
        %s171 = scalar_select %p170, %s17, 1
        %s172 = smul.addr %s171, 54
        %s173 = smul.addr %s172, 8
        %s174 = scalar_lea.vmem %s0, %s173
      $region32: #{upsampling_block.1} parent=27 // pred_fallthru
        _
    $region28: #{upsampling_block.1} parent=5 // pred_fallthru
      _
    %p175 = scmp.le.s32.totalorder 1, %s10
    %p176 = scmp.lt.s32.totalorder %s10, 5
    %p177 = pnand %p175, %p176
    %p178 = pneg %p177
    // Predicated region
    $region33: #{upsampling_block.1} parent=5 // pred_check
      _
    $region34: #{upsampling_block.1} parent=5 // pred_check_branch
      %180 = sbr.rel (%p177) target = $region36
    $region35: #{upsampling_block.1} parent=5 // pred_region
      %s181 = ssub.s32 %s10, 1
      %p182 = scmp.lt.s32.totalorder %s19, 1
      %s183 = scalar_select %p182, %s19, 1
      %s184 = smul.addr %s183, 54
      %s185 = smul.addr %s184, 8
      %s186 = scalar_lea.vmem %s0, %s185
      %p187 = pneg %p48
      %p188 = pneg %p45
      %p189 = pneg %p69
      %p190 = pneg %p66
      %p191 = pneg %p90
      %p192 = pneg %p87
      %p193 = pneg %p111
      %p194 = pneg %p108
      %p195 = pneg %p139
      %p196 = pneg %p136
      %s197 = smul.u32 16, %s20
      %p198 = scmp.lt.s32.totalorder %s19, 1
      %s199 = scalar_select %p198, %s19, 1
      %p200 = scmp.lt.s32.totalorder %s197, 31
      %s201 = scalar_select %p200, %s197, 31
      %s202 = smul.addr %s199, 32
      %s203 = sadd.s32 %s201, %s202
      %s204 = smul.addr %s203, 8
      %s205 = scalar_lea.vmem %s4, %s204
      %p206 = scmp.lt.s32.totalorder %s19, 1
      %s207 = scalar_select %p206, %s19, 1
      %s208 = smul.addr %s207, 54
      %s209 = smul.addr %s208, 8
      %s210 = scalar_lea.vmem %s0, %s209
      %s211 = smul.u32 16, %s20
      %p212 = scmp.lt.s32.totalorder %s19, 1
      %s213 = scalar_select %p212, %s19, 1
      %p214 = scmp.lt.s32.totalorder %s211, 31
      %s215 = scalar_select %p214, %s211, 31
      %s216 = smul.addr %s213, 32
      %s217 = sadd.s32 %s215, %s216
      %s218 = smul.addr %s217, 8
      %s219 = scalar_lea.vmem %s4, %s218
      %s220 = smul.u32 16, %s20
      %s221 = smul.u32 %s20, 8
      %s222 = smul.u32 %s221, 24
      %s223 = scalar_lea.vmem %s210, %s222
      %v224 = vld [vmem:[%s223] sm:$0xff]
      %v225 = vld [vmem:[%s223 + $0x8] sm:$0xff]
      %v226 = vld [vmem:[%s223 + $0x10] sm:$0x3]
      %v227 = vld [vmem:[%s223 + $0x18] sm:$0xff]
      %v228 = vld [vmem:[%s223 + $0x20] sm:$0xff]
      %v229 = vld [vmem:[%s223 + $0x28] sm:$0x3]
      %v230 = vld [vmem:[%s223 + $0x30] sm:$0xff]
      %v231 = vld [vmem:[%s223 + $0x38] sm:$0xff]
      %v232 = vld [vmem:[%s223 + $0x40] sm:$0x3]
      %v233 = vld [vmem:[%s223 + $0x48] sm:$0xff]
      %v234 = vld [vmem:[%s223 + $0x50] sm:$0xff]
      %v235 = vld [vmem:[%s223 + $0x58] sm:$0x3]
      %v236 = vld [vmem:[%s223 + $0x60] sm:$0xff]
      %v237 = vld [vmem:[%s223 + $0x68] sm:$0xff]
      %v238 = vld [vmem:[%s223 + $0x70] sm:$0x3]
      %v239 = vld [vmem:[%s223 + $0x78] sm:$0xff]
      %v240 = vld [vmem:[%s223 + $0x80] sm:$0xff]
      %v241 = vld [vmem:[%s223 + $0x88] sm:$0x3]
      %v242 = vld [vmem:[%s223 + $0x90] sm:$0xff]
      %v243 = vld [vmem:[%s223 + $0x98] sm:$0xff]
      %v244 = vld [vmem:[%s223 + $0xa0] sm:$0x3]
      %v245 = vld [vmem:[%s223 + $0xa8] sm:$0xff]
      %v246 = vld [vmem:[%s223 + $0xb0] sm:$0xff]
      %v247 = vld [vmem:[%s223 + $0xb8] sm:$0x3]
      %s248 = sadd.s32 %s221, 1
      %s249 = smul.u32 %s248, 24
      %s250 = scalar_lea.vmem %s210, %s249
      %v251 = vld [vmem:[%s250] sm:$0xff]
      %v252 = vld [vmem:[%s250 + $0x8] sm:$0xff]
      %v253 = vld [vmem:[%s250 + $0x10] sm:$0x3]
      %v254 = vld [vmem:[%s250 + $0x18] sm:$0xff]
      %v255 = vld [vmem:[%s250 + $0x20] sm:$0xff]
      %v256 = vld [vmem:[%s250 + $0x28] sm:$0x3]
      %v257 = vld [vmem:[%s250 + $0x30] sm:$0xff]
      %v258 = vld [vmem:[%s250 + $0x38] sm:$0xff]
      %v259 = vld [vmem:[%s250 + $0x40] sm:$0x3]
      %v260 = vld [vmem:[%s250 + $0x48] sm:$0xff]
      %v261 = vld [vmem:[%s250 + $0x50] sm:$0xff]
      %v262 = vld [vmem:[%s250 + $0x58] sm:$0x3]
      %v263 = vld [vmem:[%s250 + $0x60] sm:$0xff]
      %v264 = vld [vmem:[%s250 + $0x68] sm:$0xff]
      %v265 = vld [vmem:[%s250 + $0x70] sm:$0x3]
      %v266 = vld [vmem:[%s250 + $0x78] sm:$0xff]
      %v267 = vld [vmem:[%s250 + $0x80] sm:$0xff]
      %v268 = vld [vmem:[%s250 + $0x88] sm:$0x3]
      %v269 = vld [vmem:[%s250 + $0x90] sm:$0xff]
      %v270 = vld [vmem:[%s250 + $0x98] sm:$0xff]
      %v271 = vld [vmem:[%s250 + $0xa0] sm:$0x3]
      %v272 = vld [vmem:[%s250 + $0xa8] sm:$0xff]
      %v273 = vld [vmem:[%s250 + $0xb0] sm:$0xff]
      %v274 = vld [vmem:[%s250 + $0xb8] sm:$0x3]
      %s275 = sadd.s32 %s221, 2
      %s276 = smul.u32 %s275, 24
      %s277 = scalar_lea.vmem %s210, %s276
      %v278 = vld [vmem:[%s277] sm:$0xff]
      %v279 = vld [vmem:[%s277 + $0x8] sm:$0xff]
      %v280 = vld [vmem:[%s277 + $0x10] sm:$0x3]
      %v281 = vld [vmem:[%s277 + $0x18] sm:$0xff]
      %v282 = vld [vmem:[%s277 + $0x20] sm:$0xff]
      %v283 = vld [vmem:[%s277 + $0x28] sm:$0x3]
      %v284 = vld [vmem:[%s277 + $0x30] sm:$0xff]
      %v285 = vld [vmem:[%s277 + $0x38] sm:$0xff]
      %v286 = vld [vmem:[%s277 + $0x40] sm:$0x3]
      %v287 = vld [vmem:[%s277 + $0x48] sm:$0xff]
      %v288 = vld [vmem:[%s277 + $0x50] sm:$0xff]
      %v289 = vld [vmem:[%s277 + $0x58] sm:$0x3]
      %v290 = vld [vmem:[%s277 + $0x60] sm:$0xff]
      %v291 = vld [vmem:[%s277 + $0x68] sm:$0xff]
      %v292 = vld [vmem:[%s277 + $0x70] sm:$0x3]
      %v293 = vld [vmem:[%s277 + $0x78] sm:$0xff]
      %v294 = vld [vmem:[%s277 + $0x80] sm:$0xff]
      %v295 = vld [vmem:[%s277 + $0x88] sm:$0x3]
      %v296 = vld [vmem:[%s277 + $0x90] sm:$0xff]
      %v297 = vld [vmem:[%s277 + $0x98] sm:$0xff]
      %v298 = vld [vmem:[%s277 + $0xa0] sm:$0x3]
      %v299 = vld [vmem:[%s277 + $0xa8] sm:$0xff]
      %v300 = vld [vmem:[%s277 + $0xb0] sm:$0xff]
      %v301 = vld [vmem:[%s277 + $0xb8] sm:$0x3]
      %vm326 = vcmask 1046528
      %v327 = vrot.slane %v224, 1
      %v328 = vrot.slane %v225, 1
      %v329 = vsel %vm326, %v327, %v328
      %v330 = vrot.slane %v226, 1
      %v331 = vsel %vm326, %v328, %v330
      %v332 = vrot.slane %v227, 1
      %v333 = vrot.slane %v228, 1
      %v334 = vsel %vm326, %v332, %v333
      %v335 = vrot.slane %v229, 1
      %v336 = vsel %vm326, %v333, %v335
      %v337 = vrot.slane %v230, 1
      %v338 = vrot.slane %v231, 1
      %v339 = vsel %vm326, %v337, %v338
      %v340 = vrot.slane %v232, 1
      %v341 = vsel %vm326, %v338, %v340
      %v342 = vrot.slane %v233, 1
      %v343 = vrot.slane %v234, 1
      %v344 = vsel %vm326, %v342, %v343
      %v345 = vrot.slane %v235, 1
      %v346 = vsel %vm326, %v343, %v345
      %v347 = vrot.slane %v236, 1
      %v348 = vrot.slane %v237, 1
      %v349 = vsel %vm326, %v347, %v348
      %v350 = vrot.slane %v238, 1
      %v351 = vsel %vm326, %v348, %v350
      %v352 = vrot.slane %v239, 1
      %v353 = vrot.slane %v240, 1
      %v354 = vsel %vm326, %v352, %v353
      %v355 = vrot.slane %v241, 1
      %v356 = vsel %vm326, %v353, %v355
      %v357 = vrot.slane %v242, 1
      %v358 = vrot.slane %v243, 1
      %v359 = vsel %vm326, %v357, %v358
      %v360 = vrot.slane %v244, 1
      %v361 = vsel %vm326, %v358, %v360
      %v362 = vrot.slane %v245, 1
      %v363 = vrot.slane %v246, 1
      %v364 = vsel %vm326, %v362, %v363
      %v365 = vrot.slane %v247, 1
      %v366 = vsel %vm326, %v363, %v365
      %367 = vrot.lane.b32.xlu0 %v329, 4
      %v368 = vpop.permute.xlu0 %367
      %369 = vrot.lane.b32.xlu0 %v331, 4
      %v370 = vpop.permute.xlu0 %369
      %371 = vrot.lane.b32.xlu0 %v334, 4
      %v372 = vpop.permute.xlu0 %371
      %373 = vrot.lane.b32.xlu0 %v336, 4
      %v374 = vpop.permute.xlu0 %373
      %375 = vrot.lane.b32.xlu0 %v339, 4
      %v376 = vpop.permute.xlu0 %375
      %377 = vrot.lane.b32.xlu0 %v341, 4
      %v378 = vpop.permute.xlu0 %377
      %379 = vrot.lane.b32.xlu0 %v344, 4
      %v380 = vpop.permute.xlu0 %379
      %381 = vrot.lane.b32.xlu0 %v346, 4
      %v382 = vpop.permute.xlu0 %381
      %383 = vrot.lane.b32.xlu0 %v349, 4
      %v384 = vpop.permute.xlu0 %383
      %385 = vrot.lane.b32.xlu0 %v351, 4
      %v386 = vpop.permute.xlu0 %385
      %387 = vrot.lane.b32.xlu0 %v354, 4
      %v388 = vpop.permute.xlu0 %387
      %389 = vrot.lane.b32.xlu0 %v356, 4
      %v390 = vpop.permute.xlu0 %389
      %391 = vrot.lane.b32.xlu0 %v359, 4
      %v392 = vpop.permute.xlu0 %391
      %393 = vrot.lane.b32.xlu0 %v361, 4
      %v394 = vpop.permute.xlu0 %393
      %395 = vrot.lane.b32.xlu0 %v364, 4
      %v396 = vpop.permute.xlu0 %395
      %397 = vrot.lane.b32.xlu0 %v366, 4
      %v398 = vpop.permute.xlu0 %397
      %vm415 = vcmask 1045504
      %v416 = vrot.slane %v224, 2
      %v417 = vrot.slane %v225, 2
      %v418 = vsel %vm415, %v416, %v417
      %v419 = vrot.slane %v226, 2
      %v420 = vsel %vm415, %v417, %v419
      %v421 = vrot.slane %v227, 2
      %v422 = vrot.slane %v228, 2
      %v423 = vsel %vm415, %v421, %v422
      %v424 = vrot.slane %v229, 2
      %v425 = vsel %vm415, %v422, %v424
      %v426 = vrot.slane %v230, 2
      %v427 = vrot.slane %v231, 2
      %v428 = vsel %vm415, %v426, %v427
      %v429 = vrot.slane %v232, 2
      %v430 = vsel %vm415, %v427, %v429
      %v431 = vrot.slane %v233, 2
      %v432 = vrot.slane %v234, 2
      %v433 = vsel %vm415, %v431, %v432
      %v434 = vrot.slane %v235, 2
      %v435 = vsel %vm415, %v432, %v434
      %v436 = vrot.slane %v236, 2
      %v437 = vrot.slane %v237, 2
      %v438 = vsel %vm415, %v436, %v437
      %v439 = vrot.slane %v238, 2
      %v440 = vsel %vm415, %v437, %v439
      %v441 = vrot.slane %v239, 2
      %v442 = vrot.slane %v240, 2
      %v443 = vsel %vm415, %v441, %v442
      %v444 = vrot.slane %v241, 2
      %v445 = vsel %vm415, %v442, %v444
      %v446 = vrot.slane %v242, 2
      %v447 = vrot.slane %v243, 2
      %v448 = vsel %vm415, %v446, %v447
      %v449 = vrot.slane %v244, 2
      %v450 = vsel %vm415, %v447, %v449
      %v451 = vrot.slane %v245, 2
      %v452 = vrot.slane %v246, 2
      %v453 = vsel %vm415, %v451, %v452
      %v454 = vrot.slane %v247, 2
      %v455 = vsel %vm415, %v452, %v454
      %456 = vrot.lane.b32.xlu0 %v418, 8
      %v457 = vpop.permute.xlu0 %456
      %458 = vrot.lane.b32.xlu0 %v420, 8
      %v459 = vpop.permute.xlu0 %458
      %460 = vrot.lane.b32.xlu0 %v423, 8
      %v461 = vpop.permute.xlu0 %460
      %462 = vrot.lane.b32.xlu0 %v425, 8
      %v463 = vpop.permute.xlu0 %462
      %464 = vrot.lane.b32.xlu0 %v428, 8
      %v465 = vpop.permute.xlu0 %464
      %466 = vrot.lane.b32.xlu0 %v430, 8
      %v467 = vpop.permute.xlu0 %466
      %468 = vrot.lane.b32.xlu0 %v433, 8
      %v469 = vpop.permute.xlu0 %468
      %470 = vrot.lane.b32.xlu0 %v435, 8
      %v471 = vpop.permute.xlu0 %470
      %472 = vrot.lane.b32.xlu0 %v438, 8
      %v473 = vpop.permute.xlu0 %472
      %474 = vrot.lane.b32.xlu0 %v440, 8
      %v475 = vpop.permute.xlu0 %474
      %476 = vrot.lane.b32.xlu0 %v443, 8
      %v477 = vpop.permute.xlu0 %476
      %478 = vrot.lane.b32.xlu0 %v445, 8
      %v479 = vpop.permute.xlu0 %478
      %480 = vrot.lane.b32.xlu0 %v448, 8
      %v481 = vpop.permute.xlu0 %480
      %482 = vrot.lane.b32.xlu0 %v450, 8
      %v483 = vpop.permute.xlu0 %482
      %484 = vrot.lane.b32.xlu0 %v453, 8
      %v485 = vpop.permute.xlu0 %484
      %486 = vrot.lane.b32.xlu0 %v455, 8
      %v487 = vpop.permute.xlu0 %486
      %520 = vrot.lane.b32.xlu0 %v251, 12
      %v521 = vpop.permute.xlu0 %520
      %522 = vrot.lane.b32.xlu0 %v252, 12
      %v523 = vpop.permute.xlu0 %522
      %524 = vrot.lane.b32.xlu0 %v254, 12
      %v525 = vpop.permute.xlu0 %524
      %526 = vrot.lane.b32.xlu0 %v255, 12
      %v527 = vpop.permute.xlu0 %526
      %528 = vrot.lane.b32.xlu0 %v257, 12
      %v529 = vpop.permute.xlu0 %528
      %530 = vrot.lane.b32.xlu0 %v258, 12
      %v531 = vpop.permute.xlu0 %530
      %532 = vrot.lane.b32.xlu0 %v260, 12
      %v533 = vpop.permute.xlu0 %532
      %534 = vrot.lane.b32.xlu0 %v261, 12
      %v535 = vpop.permute.xlu0 %534
      %536 = vrot.lane.b32.xlu0 %v263, 12
      %v537 = vpop.permute.xlu0 %536
      %538 = vrot.lane.b32.xlu0 %v264, 12
      %v539 = vpop.permute.xlu0 %538
      %540 = vrot.lane.b32.xlu0 %v266, 12
      %v541 = vpop.permute.xlu0 %540
      %542 = vrot.lane.b32.xlu0 %v267, 12
      %v543 = vpop.permute.xlu0 %542
      %544 = vrot.lane.b32.xlu0 %v269, 12
      %v545 = vpop.permute.xlu0 %544
      %546 = vrot.lane.b32.xlu0 %v270, 12
      %v547 = vpop.permute.xlu0 %546
      %548 = vrot.lane.b32.xlu0 %v272, 12
      %v549 = vpop.permute.xlu0 %548
      %550 = vrot.lane.b32.xlu0 %v273, 12
      %v551 = vpop.permute.xlu0 %550
      %v576 = vrot.slane %v251, 1
      %v577 = vrot.slane %v252, 1
      %v578 = vsel %vm326, %v576, %v577
      %v579 = vrot.slane %v253, 1
      %v580 = vsel %vm326, %v577, %v579
      %v581 = vrot.slane %v254, 1
      %v582 = vrot.slane %v255, 1
      %v583 = vsel %vm326, %v581, %v582
      %v584 = vrot.slane %v256, 1
      %v585 = vsel %vm326, %v582, %v584
      %v586 = vrot.slane %v257, 1
      %v587 = vrot.slane %v258, 1
      %v588 = vsel %vm326, %v586, %v587
      %v589 = vrot.slane %v259, 1
      %v590 = vsel %vm326, %v587, %v589
      %v591 = vrot.slane %v260, 1
      %v592 = vrot.slane %v261, 1
      %v593 = vsel %vm326, %v591, %v592
      %v594 = vrot.slane %v262, 1
      %v595 = vsel %vm326, %v592, %v594
      %v596 = vrot.slane %v263, 1
      %v597 = vrot.slane %v264, 1
      %v598 = vsel %vm326, %v596, %v597
      %v599 = vrot.slane %v265, 1
      %v600 = vsel %vm326, %v597, %v599
      %v601 = vrot.slane %v266, 1
      %v602 = vrot.slane %v267, 1
      %v603 = vsel %vm326, %v601, %v602
      %v604 = vrot.slane %v268, 1
      %v605 = vsel %vm326, %v602, %v604
      %v606 = vrot.slane %v269, 1
      %v607 = vrot.slane %v270, 1
      %v608 = vsel %vm326, %v606, %v607
      %v609 = vrot.slane %v271, 1
      %v610 = vsel %vm326, %v607, %v609
      %v611 = vrot.slane %v272, 1
      %v612 = vrot.slane %v273, 1
      %v613 = vsel %vm326, %v611, %v612
      %v614 = vrot.slane %v274, 1
      %v615 = vsel %vm326, %v612, %v614
      %616 = vrot.lane.b32.xlu0 %v578, 16
      %v617 = vpop.permute.xlu0 %616
      %618 = vrot.lane.b32.xlu0 %v580, 16
      %v619 = vpop.permute.xlu0 %618
      %620 = vrot.lane.b32.xlu0 %v583, 16
      %v621 = vpop.permute.xlu0 %620
      %622 = vrot.lane.b32.xlu0 %v585, 16
      %v623 = vpop.permute.xlu0 %622
      %624 = vrot.lane.b32.xlu0 %v588, 16
      %v625 = vpop.permute.xlu0 %624
      %626 = vrot.lane.b32.xlu0 %v590, 16
      %v627 = vpop.permute.xlu0 %626
      %628 = vrot.lane.b32.xlu0 %v593, 16
      %v629 = vpop.permute.xlu0 %628
      %630 = vrot.lane.b32.xlu0 %v595, 16
      %v631 = vpop.permute.xlu0 %630
      %632 = vrot.lane.b32.xlu0 %v598, 16
      %v633 = vpop.permute.xlu0 %632
      %634 = vrot.lane.b32.xlu0 %v600, 16
      %v635 = vpop.permute.xlu0 %634
      %636 = vrot.lane.b32.xlu0 %v603, 16
      %v637 = vpop.permute.xlu0 %636
      %638 = vrot.lane.b32.xlu0 %v605, 16
      %v639 = vpop.permute.xlu0 %638
      %640 = vrot.lane.b32.xlu0 %v608, 16
      %v641 = vpop.permute.xlu0 %640
      %642 = vrot.lane.b32.xlu0 %v610, 16
      %v643 = vpop.permute.xlu0 %642
      %644 = vrot.lane.b32.xlu0 %v613, 16
      %v645 = vpop.permute.xlu0 %644
      %646 = vrot.lane.b32.xlu0 %v615, 16
      %v647 = vpop.permute.xlu0 %646
      %v664 = vrot.slane %v251, 2
      %v665 = vrot.slane %v252, 2
      %v666 = vsel %vm415, %v664, %v665
      %v667 = vrot.slane %v253, 2
      %v668 = vsel %vm415, %v665, %v667
      %v669 = vrot.slane %v254, 2
      %v670 = vrot.slane %v255, 2
      %v671 = vsel %vm415, %v669, %v670
      %v672 = vrot.slane %v256, 2
      %v673 = vsel %vm415, %v670, %v672
      %v674 = vrot.slane %v257, 2
      %v675 = vrot.slane %v258, 2
      %v676 = vsel %vm415, %v674, %v675
      %v677 = vrot.slane %v259, 2
      %v678 = vsel %vm415, %v675, %v677
      %v679 = vrot.slane %v260, 2
      %v680 = vrot.slane %v261, 2
      %v681 = vsel %vm415, %v679, %v680
      %v682 = vrot.slane %v262, 2
      %v683 = vsel %vm415, %v680, %v682
      %v684 = vrot.slane %v263, 2
      %v685 = vrot.slane %v264, 2
      %v686 = vsel %vm415, %v684, %v685
      %v687 = vrot.slane %v265, 2
      %v688 = vsel %vm415, %v685, %v687
      %v689 = vrot.slane %v266, 2
      %v690 = vrot.slane %v267, 2
      %v691 = vsel %vm415, %v689, %v690
      %v692 = vrot.slane %v268, 2
      %v693 = vsel %vm415, %v690, %v692
      %v694 = vrot.slane %v269, 2
      %v695 = vrot.slane %v270, 2
      %v696 = vsel %vm415, %v694, %v695
      %v697 = vrot.slane %v271, 2
      %v698 = vsel %vm415, %v695, %v697
      %v699 = vrot.slane %v272, 2
      %v700 = vrot.slane %v273, 2
      %v701 = vsel %vm415, %v699, %v700
      %v702 = vrot.slane %v274, 2
      %v703 = vsel %vm415, %v700, %v702
      %704 = vrot.lane.b32.xlu0 %v666, 20
      %v705 = vpop.permute.xlu0 %704
      %706 = vrot.lane.b32.xlu0 %v668, 20
      %v707 = vpop.permute.xlu0 %706
      %708 = vrot.lane.b32.xlu0 %v671, 20
      %v709 = vpop.permute.xlu0 %708
      %710 = vrot.lane.b32.xlu0 %v673, 20
      %v711 = vpop.permute.xlu0 %710
      %712 = vrot.lane.b32.xlu0 %v676, 20
      %v713 = vpop.permute.xlu0 %712
      %714 = vrot.lane.b32.xlu0 %v678, 20
      %v715 = vpop.permute.xlu0 %714
      %716 = vrot.lane.b32.xlu0 %v681, 20
      %v717 = vpop.permute.xlu0 %716
      %718 = vrot.lane.b32.xlu0 %v683, 20
      %v719 = vpop.permute.xlu0 %718
      %720 = vrot.lane.b32.xlu0 %v686, 20
      %v721 = vpop.permute.xlu0 %720
      %722 = vrot.lane.b32.xlu0 %v688, 20
      %v723 = vpop.permute.xlu0 %722
      %724 = vrot.lane.b32.xlu0 %v691, 20
      %v725 = vpop.permute.xlu0 %724
      %726 = vrot.lane.b32.xlu0 %v693, 20
      %v727 = vpop.permute.xlu0 %726
      %728 = vrot.lane.b32.xlu0 %v696, 20
      %v729 = vpop.permute.xlu0 %728
      %730 = vrot.lane.b32.xlu0 %v698, 20
      %v731 = vpop.permute.xlu0 %730
      %732 = vrot.lane.b32.xlu0 %v701, 20
      %v733 = vpop.permute.xlu0 %732
      %734 = vrot.lane.b32.xlu0 %v703, 20
      %v735 = vpop.permute.xlu0 %734
      %768 = vrot.lane.b32.xlu0 %v278, 24
      %v769 = vpop.permute.xlu0 %768
      %770 = vrot.lane.b32.xlu0 %v279, 24
      %v771 = vpop.permute.xlu0 %770
      %772 = vrot.lane.b32.xlu0 %v281, 24
      %v773 = vpop.permute.xlu0 %772
      %774 = vrot.lane.b32.xlu0 %v282, 24
      %v775 = vpop.permute.xlu0 %774
      %776 = vrot.lane.b32.xlu0 %v284, 24
      %v777 = vpop.permute.xlu0 %776
      %778 = vrot.lane.b32.xlu0 %v285, 24
      %v779 = vpop.permute.xlu0 %778
      %780 = vrot.lane.b32.xlu0 %v287, 24
      %v781 = vpop.permute.xlu0 %780
      %782 = vrot.lane.b32.xlu0 %v288, 24
      %v783 = vpop.permute.xlu0 %782
      %784 = vrot.lane.b32.xlu0 %v290, 24
      %v785 = vpop.permute.xlu0 %784
      %786 = vrot.lane.b32.xlu0 %v291, 24
      %v787 = vpop.permute.xlu0 %786
      %788 = vrot.lane.b32.xlu0 %v293, 24
      %v789 = vpop.permute.xlu0 %788
      %790 = vrot.lane.b32.xlu0 %v294, 24
      %v791 = vpop.permute.xlu0 %790
      %792 = vrot.lane.b32.xlu0 %v296, 24
      %v793 = vpop.permute.xlu0 %792
      %794 = vrot.lane.b32.xlu0 %v297, 24
      %v795 = vpop.permute.xlu0 %794
      %796 = vrot.lane.b32.xlu0 %v299, 24
      %v797 = vpop.permute.xlu0 %796
      %798 = vrot.lane.b32.xlu0 %v300, 24
      %v799 = vpop.permute.xlu0 %798
      %v824 = vrot.slane %v278, 1
      %v825 = vrot.slane %v279, 1
      %v826 = vsel %vm326, %v824, %v825
      %v827 = vrot.slane %v280, 1
      %v828 = vsel %vm326, %v825, %v827
      %v829 = vrot.slane %v281, 1
      %v830 = vrot.slane %v282, 1
      %v831 = vsel %vm326, %v829, %v830
      %v832 = vrot.slane %v283, 1
      %v833 = vsel %vm326, %v830, %v832
      %v834 = vrot.slane %v284, 1
      %v835 = vrot.slane %v285, 1
      %v836 = vsel %vm326, %v834, %v835
      %v837 = vrot.slane %v286, 1
      %v838 = vsel %vm326, %v835, %v837
      %v839 = vrot.slane %v287, 1
      %v840 = vrot.slane %v288, 1
      %v841 = vsel %vm326, %v839, %v840
      %v842 = vrot.slane %v289, 1
      %v843 = vsel %vm326, %v840, %v842
      %v844 = vrot.slane %v290, 1
      %v845 = vrot.slane %v291, 1
      %v846 = vsel %vm326, %v844, %v845
      %v847 = vrot.slane %v292, 1
      %v848 = vsel %vm326, %v845, %v847
      %v849 = vrot.slane %v293, 1
      %v850 = vrot.slane %v294, 1
      %v851 = vsel %vm326, %v849, %v850
      %v852 = vrot.slane %v295, 1
      %v853 = vsel %vm326, %v850, %v852
      %v854 = vrot.slane %v296, 1
      %v855 = vrot.slane %v297, 1
      %v856 = vsel %vm326, %v854, %v855
      %v857 = vrot.slane %v298, 1
      %v858 = vsel %vm326, %v855, %v857
      %v859 = vrot.slane %v299, 1
      %v860 = vrot.slane %v300, 1
      %v861 = vsel %vm326, %v859, %v860
      %v862 = vrot.slane %v301, 1
      %v863 = vsel %vm326, %v860, %v862
      %864 = vrot.lane.b32.xlu0 %v826, 28
      %v865 = vpop.permute.xlu0 %864
      %866 = vrot.lane.b32.xlu0 %v828, 28
      %v867 = vpop.permute.xlu0 %866
      %868 = vrot.lane.b32.xlu0 %v831, 28
      %v869 = vpop.permute.xlu0 %868
      %870 = vrot.lane.b32.xlu0 %v833, 28
      %v871 = vpop.permute.xlu0 %870
      %872 = vrot.lane.b32.xlu0 %v836, 28
      %v873 = vpop.permute.xlu0 %872
      %874 = vrot.lane.b32.xlu0 %v838, 28
      %v875 = vpop.permute.xlu0 %874
      %876 = vrot.lane.b32.xlu0 %v841, 28
      %v877 = vpop.permute.xlu0 %876
      %878 = vrot.lane.b32.xlu0 %v843, 28
      %v879 = vpop.permute.xlu0 %878
      %880 = vrot.lane.b32.xlu0 %v846, 28
      %v881 = vpop.permute.xlu0 %880
      %882 = vrot.lane.b32.xlu0 %v848, 28
      %v883 = vpop.permute.xlu0 %882
      %884 = vrot.lane.b32.xlu0 %v851, 28
      %v885 = vpop.permute.xlu0 %884
      %886 = vrot.lane.b32.xlu0 %v853, 28
      %v887 = vpop.permute.xlu0 %886
      %888 = vrot.lane.b32.xlu0 %v856, 28
      %v889 = vpop.permute.xlu0 %888
      %890 = vrot.lane.b32.xlu0 %v858, 28
      %v891 = vpop.permute.xlu0 %890
      %892 = vrot.lane.b32.xlu0 %v861, 28
      %v893 = vpop.permute.xlu0 %892
      %894 = vrot.lane.b32.xlu0 %v863, 28
      %v895 = vpop.permute.xlu0 %894
      %v912 = vrot.slane %v278, 2
      %v913 = vrot.slane %v279, 2
      %v914 = vsel %vm415, %v912, %v913
      %v915 = vrot.slane %v280, 2
      %v916 = vsel %vm415, %v913, %v915
      %v917 = vrot.slane %v281, 2
      %v918 = vrot.slane %v282, 2
      %v919 = vsel %vm415, %v917, %v918
      %v920 = vrot.slane %v283, 2
      %v921 = vsel %vm415, %v918, %v920
      %v922 = vrot.slane %v284, 2
      %v923 = vrot.slane %v285, 2
      %v924 = vsel %vm415, %v922, %v923
      %v925 = vrot.slane %v286, 2
      %v926 = vsel %vm415, %v923, %v925
      %v927 = vrot.slane %v287, 2
      %v928 = vrot.slane %v288, 2
      %v929 = vsel %vm415, %v927, %v928
      %v930 = vrot.slane %v289, 2
      %v931 = vsel %vm415, %v928, %v930
      %v932 = vrot.slane %v290, 2
      %v933 = vrot.slane %v291, 2
      %v934 = vsel %vm415, %v932, %v933
      %v935 = vrot.slane %v292, 2
      %v936 = vsel %vm415, %v933, %v935
      %v937 = vrot.slane %v293, 2
      %v938 = vrot.slane %v294, 2
      %v939 = vsel %vm415, %v937, %v938
      %v940 = vrot.slane %v295, 2
      %v941 = vsel %vm415, %v938, %v940
      %v942 = vrot.slane %v296, 2
      %v943 = vrot.slane %v297, 2
      %v944 = vsel %vm415, %v942, %v943
      %v945 = vrot.slane %v298, 2
      %v946 = vsel %vm415, %v943, %v945
      %v947 = vrot.slane %v299, 2
      %v948 = vrot.slane %v300, 2
      %v949 = vsel %vm415, %v947, %v948
      %v950 = vrot.slane %v301, 2
      %v951 = vsel %vm415, %v948, %v950
      %952 = vrot.lane.b32.xlu0 %v914, 32
      %v953 = vpop.permute.xlu0 %952
      %954 = vrot.lane.b32.xlu0 %v916, 32
      %v955 = vpop.permute.xlu0 %954
      %956 = vrot.lane.b32.xlu0 %v919, 32
      %v957 = vpop.permute.xlu0 %956
      %958 = vrot.lane.b32.xlu0 %v921, 32
      %v959 = vpop.permute.xlu0 %958
      %960 = vrot.lane.b32.xlu0 %v924, 32
      %v961 = vpop.permute.xlu0 %960
      %962 = vrot.lane.b32.xlu0 %v926, 32
      %v963 = vpop.permute.xlu0 %962
      %964 = vrot.lane.b32.xlu0 %v929, 32
      %v965 = vpop.permute.xlu0 %964
      %966 = vrot.lane.b32.xlu0 %v931, 32
      %v967 = vpop.permute.xlu0 %966
      %968 = vrot.lane.b32.xlu0 %v934, 32
      %v969 = vpop.permute.xlu0 %968
      %970 = vrot.lane.b32.xlu0 %v936, 32
      %v971 = vpop.permute.xlu0 %970
      %972 = vrot.lane.b32.xlu0 %v939, 32
      %v973 = vpop.permute.xlu0 %972
      %974 = vrot.lane.b32.xlu0 %v941, 32
      %v975 = vpop.permute.xlu0 %974
      %976 = vrot.lane.b32.xlu0 %v944, 32
      %v977 = vpop.permute.xlu0 %976
      %978 = vrot.lane.b32.xlu0 %v946, 32
      %v979 = vpop.permute.xlu0 %978
      %980 = vrot.lane.b32.xlu0 %v949, 32
      %v981 = vpop.permute.xlu0 %980
      %982 = vrot.lane.b32.xlu0 %v951, 32
      %v983 = vpop.permute.xlu0 %982
      %vm1000 = vcmask 31744
      %v1001 = vsel %vm1000, %v224, %v368
      %v1002 = vsel %vm1000, %v225, %v370
      %v1003 = vsel %vm1000, %v227, %v372
      %v1004 = vsel %vm1000, %v228, %v374
      %v1005 = vsel %vm1000, %v230, %v376
      %v1006 = vsel %vm1000, %v231, %v378
      %v1007 = vsel %vm1000, %v233, %v380
      %v1008 = vsel %vm1000, %v234, %v382
      %v1009 = vsel %vm1000, %v236, %v384
      %v1010 = vsel %vm1000, %v237, %v386
      %v1011 = vsel %vm1000, %v239, %v388
      %v1012 = vsel %vm1000, %v240, %v390
      %v1013 = vsel %vm1000, %v242, %v392
      %v1014 = vsel %vm1000, %v243, %v394
      %v1015 = vsel %vm1000, %v245, %v396
      %v1016 = vsel %vm1000, %v246, %v398
      %vm1017 = vcmask 64512
      %v1018 = vsel %vm1017, %v1001, %v457
      %v1019 = vsel %vm1017, %v1002, %v459
      %v1020 = vsel %vm1017, %v1003, %v461
      %v1021 = vsel %vm1017, %v1004, %v463
      %v1022 = vsel %vm1017, %v1005, %v465
      %v1023 = vsel %vm1017, %v1006, %v467
      %v1024 = vsel %vm1017, %v1007, %v469
      %v1025 = vsel %vm1017, %v1008, %v471
      %v1026 = vsel %vm1017, %v1009, %v473
      %v1027 = vsel %vm1017, %v1010, %v475
      %v1028 = vsel %vm1017, %v1011, %v477
      %v1029 = vsel %vm1017, %v1012, %v479
      %v1030 = vsel %vm1017, %v1013, %v481
      %v1031 = vsel %vm1017, %v1014, %v483
      %v1032 = vsel %vm1017, %v1015, %v485
      %v1033 = vsel %vm1017, %v1016, %v487
      %vm1034 = vcmask 97280
      %v1035 = vsel %vm1034, %v1018, %v521
      %v1036 = vsel %vm1034, %v1019, %v523
      %v1037 = vsel %vm1034, %v1020, %v525
      %v1038 = vsel %vm1034, %v1021, %v527
      %v1039 = vsel %vm1034, %v1022, %v529
      %v1040 = vsel %vm1034, %v1023, %v531
      %v1041 = vsel %vm1034, %v1024, %v533
      %v1042 = vsel %vm1034, %v1025, %v535
      %v1043 = vsel %vm1034, %v1026, %v537
      %v1044 = vsel %vm1034, %v1027, %v539
      %v1045 = vsel %vm1034, %v1028, %v541
      %v1046 = vsel %vm1034, %v1029, %v543
      %v1047 = vsel %vm1034, %v1030, %v545
      %v1048 = vsel %vm1034, %v1031, %v547
      %v1049 = vsel %vm1034, %v1032, %v549
      %v1050 = vsel %vm1034, %v1033, %v551
      %vm1051 = vcmask 130048
      %v1052 = vsel %vm1051, %v1035, %v617
      %v1053 = vsel %vm1051, %v1036, %v619
      %v1054 = vsel %vm1051, %v1037, %v621
      %v1055 = vsel %vm1051, %v1038, %v623
      %v1056 = vsel %vm1051, %v1039, %v625
      %v1057 = vsel %vm1051, %v1040, %v627
      %v1058 = vsel %vm1051, %v1041, %v629
      %v1059 = vsel %vm1051, %v1042, %v631
      %v1060 = vsel %vm1051, %v1043, %v633
      %v1061 = vsel %vm1051, %v1044, %v635
      %v1062 = vsel %vm1051, %v1045, %v637
      %v1063 = vsel %vm1051, %v1046, %v639
      %v1064 = vsel %vm1051, %v1047, %v641
      %v1065 = vsel %vm1051, %v1048, %v643
      %v1066 = vsel %vm1051, %v1049, %v645
      %v1067 = vsel %vm1051, %v1050, %v647
      %vm1068 = vcmask 162816
      %v1069 = vsel %vm1068, %v1052, %v705
      %v1070 = vsel %vm1068, %v1053, %v707
      %v1071 = vsel %vm1068, %v1054, %v709
      %v1072 = vsel %vm1068, %v1055, %v711
      %v1073 = vsel %vm1068, %v1056, %v713
      %v1074 = vsel %vm1068, %v1057, %v715
      %v1075 = vsel %vm1068, %v1058, %v717
      %v1076 = vsel %vm1068, %v1059, %v719
      %v1077 = vsel %vm1068, %v1060, %v721
      %v1078 = vsel %vm1068, %v1061, %v723
      %v1079 = vsel %vm1068, %v1062, %v725
      %v1080 = vsel %vm1068, %v1063, %v727
      %v1081 = vsel %vm1068, %v1064, %v729
      %v1082 = vsel %vm1068, %v1065, %v731
      %v1083 = vsel %vm1068, %v1066, %v733
      %v1084 = vsel %vm1068, %v1067, %v735
      %vm1085 = vcmask 195584
      %v1086 = vsel %vm1085, %v1069, %v769
      %v1087 = vsel %vm1085, %v1070, %v771
      %v1088 = vsel %vm1085, %v1071, %v773
      %v1089 = vsel %vm1085, %v1072, %v775
      %v1090 = vsel %vm1085, %v1073, %v777
      %v1091 = vsel %vm1085, %v1074, %v779
      %v1092 = vsel %vm1085, %v1075, %v781
      %v1093 = vsel %vm1085, %v1076, %v783
      %v1094 = vsel %vm1085, %v1077, %v785
      %v1095 = vsel %vm1085, %v1078, %v787
      %v1096 = vsel %vm1085, %v1079, %v789
      %v1097 = vsel %vm1085, %v1080, %v791
      %v1098 = vsel %vm1085, %v1081, %v793
      %v1099 = vsel %vm1085, %v1082, %v795
      %v1100 = vsel %vm1085, %v1083, %v797
      %v1101 = vsel %vm1085, %v1084, %v799
      %vm1102 = vcmask 228352
      %v1103 = vsel %vm1102, %v1086, %v865
      %v1104 = vsel %vm1102, %v1087, %v867
      %v1105 = vsel %vm1102, %v1088, %v869
      %v1106 = vsel %vm1102, %v1089, %v871
      %v1107 = vsel %vm1102, %v1090, %v873
      %v1108 = vsel %vm1102, %v1091, %v875
      %v1109 = vsel %vm1102, %v1092, %v877
      %v1110 = vsel %vm1102, %v1093, %v879
      %v1111 = vsel %vm1102, %v1094, %v881
      %v1112 = vsel %vm1102, %v1095, %v883
      %v1113 = vsel %vm1102, %v1096, %v885
      %v1114 = vsel %vm1102, %v1097, %v887
      %v1115 = vsel %vm1102, %v1098, %v889
      %v1116 = vsel %vm1102, %v1099, %v891
      %v1117 = vsel %vm1102, %v1100, %v893
      %v1118 = vsel %vm1102, %v1101, %v895
      %vm1119 = vcmask 261120
      %v1120 = vsel %vm1119, %v1103, %v953
      %v1121 = vsel %vm1119, %v1104, %v955
      %v1122 = vsel %vm1119, %v1105, %v957
      %v1123 = vsel %vm1119, %v1106, %v959
      %v1124 = vsel %vm1119, %v1107, %v961
      %v1125 = vsel %vm1119, %v1108, %v963
      %v1126 = vsel %vm1119, %v1109, %v965
      %v1127 = vsel %vm1119, %v1110, %v967
      %v1128 = vsel %vm1119, %v1111, %v969
      %v1129 = vsel %vm1119, %v1112, %v971
      %v1130 = vsel %vm1119, %v1113, %v973
      %v1131 = vsel %vm1119, %v1114, %v975
      %v1132 = vsel %vm1119, %v1115, %v977
      %v1133 = vsel %vm1119, %v1116, %v979
      %v1134 = vsel %vm1119, %v1117, %v981
      %v1135 = vsel %vm1119, %v1118, %v983
      %v1136 = vld [vmem:[%s1] sm:$0xff]
      %v1137 = vld [vmem:[%s1 + $0x8] sm:$0xff]
      %v1138 = vld [vmem:[%s1 + $0x10] sm:$0xff]
      %v1139 = vld [vmem:[%s1 + $0x18] sm:$0xff]
      %v1140 = vld [vmem:[%s1 + $0x20] sm:$0xf]
      %v1141 = vld [vmem:[%s2] sm:$0x1]
      %v1143 = vlaneseq
      %v1144 = vshrl.u32 %v1143, 7
      %v1145 = vsub.s32 0, %v1144
      %v1146 = vrot.slane %v1141, %v1145
      %vm1148 = vcmask 293888
      %v1150 = vsel %vm1148, %v1120, 0
      %v1153 = vsel %vm1148, %v1121, 0
      %v1156 = vsel %vm1148, %v1122, 0
      %v1159 = vsel %vm1148, %v1123, 0
      %v1162 = vsel %vm1148, %v1124, 0
      %v1165 = vsel %vm1148, %v1125, 0
      %v1168 = vsel %vm1148, %v1126, 0
      %v1171 = vsel %vm1148, %v1127, 0
      %v1174 = vsel %vm1148, %v1128, 0
      %v1177 = vsel %vm1148, %v1129, 0
      %v1180 = vsel %vm1148, %v1130, 0
      %v1183 = vsel %vm1148, %v1131, 0
      %v1186 = vsel %vm1148, %v1132, 0
      %v1189 = vsel %vm1148, %v1133, 0
      %v1192 = vsel %vm1148, %v1134, 0
      %v1195 = vsel %vm1148, %v1135, 0
      %vm1197 = vcmask 1043456
      %v1199 = vsel %vm1197, %v1140, 0
      %1201 = vmatprep.subr.mxu0 0.0
      %1202 = vmatpush1.msra.mxu0 %v1136
      %1203 = vmatprep.subr.mxu0 0.0
      %1204 = vmatpush1.msra.mxu0 %v1137
      %1205 = vmatprep.subr.mxu0 0.0
      %1206 = vmatpush1.msra.mxu0 %v1138
      %1207 = vmatprep.subr.mxu0 0.0
      %1208 = vmatpush1.msra.mxu0 %v1139
      %1209 = vmatprep.subr.mxu0 0.0
      %1210 = vmatpush1.msra.mxu0 %v1199
      %1211 = vmatprep.subr.mxu0 0.0
      %1212 = vmatpush1.msra.mxu0 0.0
      %1213 = vmatprep.subr.mxu0 0.0
      %1214 = vmatpush1.msra.mxu0 0.0
      %1215 = vmatprep.subr.mxu0 0.0
      %1216 = vmatpush1.msra.mxu0 0.0
      %1217 = vmatprep.subr.mxu0 0.0
      %1218 = vmatpush1.msra.mxu0 0.0
      %1219 = vmatprep.subr.mxu0 0.0
      %1220 = vmatpush1.msra.mxu0 0.0
      %1221 = vmatprep.subr.mxu0 0.0
      %1222 = vmatpush1.msra.mxu0 0.0
      %1223 = vmatprep.subr.mxu0 0.0
      %1224 = vmatpush1.msra.mxu0 0.0
      %1225 = vmatprep.subr.mxu0 0.0
      %1226 = vmatpush1.msra.mxu0 0.0
      %1227 = vmatprep.subr.mxu0 0.0
      %1228 = vmatpush1.msra.mxu0 0.0
      %1229 = vmatprep.subr.mxu0 0.0
      %1230 = vmatpush1.msra.mxu0 0.0
      %1231 = vmatprep.subr.mxu0 0.0
      %1232 = vmatpush1.msra.mxu0 0.0
      %1233 = vmatprep.subr.mxu0 0.0
      %1234 = vmatpush1.msra.mxu0 0.0
      %1235 = vmatprep.subr.mxu0 0.0
      %1236 = vmatpush1.msra.mxu0 0.0
      %1237 = vmatprep.subr.mxu0 0.0
      %1238 = vmatpush1.msra.mxu0 0.0
      %1239 = vmatprep.subr.mxu0 0.0
      %1240 = vmatpush1.msra.mxu0 0.0
      %1241 = vmatprep.subr.mxu0 0.0
      %1242 = vmatpush1.msra.mxu0 0.0
      %1243 = vmatprep.subr.mxu0 0.0
      %1244 = vmatpush1.msra.mxu0 0.0
      %1245 = vmatprep.subr.mxu0 0.0
      %1246 = vmatpush1.msra.mxu0 0.0
      %1247 = vmatprep.subr.mxu0 0.0
      %1248 = vmatpush1.msra.mxu0 0.0
      %1249 = vmatprep.subr.mxu0 0.0
      %1250 = vmatpush1.msra.mxu0 0.0
      %1251 = vmatprep.subr.mxu0 0.0
      %1252 = vmatpush1.msra.mxu0 0.0
      %1253 = vmatprep.subr.mxu0 0.0
      %1254 = vmatpush1.msra.mxu0 0.0
      %1255 = vmatprep.subr.mxu0 0.0
      %1256 = vmatpush1.msra.mxu0 0.0
      %1257 = vmatprep.subr.mxu0 0.0
      %1258 = vmatpush1.msra.mxu0 0.0
      %1259 = vmatprep.subr.mxu0 0.0
      %1260 = vmatpush1.msra.mxu0 0.0
      %1261 = vmatprep.subr.mxu0 0.0
      %1262 = vmatpush1.msra.mxu0 0.0
      %1263 = vmatprep.subr.mxu0 0.0
      %1264 = vmatpush1.msra.mxu0 0.0
      %1265 = vmatprep.mubr.f32.mxu0 0.0
      %1266 = vmatmul.mubr.f32.gmra.mrb[0].mxu0 %v1150
      %v1267 = vpop.f32.mrb[0].mxu0
      %v1268 = vadd.f32 %v1146, %v1267
      %v1269 = vpop.f32.mrb[0].mxu0
      %1270 = vmatprep.mubr.f32.mxu0 0.0
      %1271 = vmatmul.mubr.f32.gmra.mrb[0].mxu0 %v1153
      %v1272 = vpop.f32.mrb[0].mxu0
      %v1273 = vadd.f32 %v1146, %v1272
      %v1274 = vpop.f32.mrb[0].mxu0
      %1275 = vmatprep.mubr.f32.mxu0 0.0
      %1276 = vmatmul.mubr.f32.gmra.mrb[0].mxu0 %v1156
      %v1277 = vpop.f32.mrb[0].mxu0
      %v1278 = vadd.f32 %v1146, %v1277
      %v1279 = vpop.f32.mrb[0].mxu0
      %1280 = vmatprep.mubr.f32.mxu0 0.0
      %1281 = vmatmul.mubr.f32.gmra.mrb[0].mxu0 %v1159
      %v1282 = vpop.f32.mrb[0].mxu0
      %v1283 = vadd.f32 %v1146, %v1282
      %v1284 = vpop.f32.mrb[0].mxu0
      %1285 = vmatprep.mubr.f32.mxu0 0.0
      %1286 = vmatmul.mubr.f32.gmra.mrb[0].mxu0 %v1162
      %v1287 = vpop.f32.mrb[0].mxu0
      %v1288 = vadd.f32 %v1146, %v1287
      %v1289 = vpop.f32.mrb[0].mxu0
      %1290 = vmatprep.mubr.f32.mxu0 0.0
      %1291 = vmatmul.mubr.f32.gmra.mrb[0].mxu0 %v1165
      %v1292 = vpop.f32.mrb[0].mxu0
      %v1293 = vadd.f32 %v1146, %v1292
      %v1294 = vpop.f32.mrb[0].mxu0
      %1295 = vmatprep.mubr.f32.mxu0 0.0
      %1296 = vmatmul.mubr.f32.gmra.mrb[0].mxu0 %v1168
      %v1297 = vpop.f32.mrb[0].mxu0
      %v1298 = vadd.f32 %v1146, %v1297
      %v1299 = vpop.f32.mrb[0].mxu0
      %1300 = vmatprep.mubr.f32.mxu0 0.0
      %1301 = vmatmul.mubr.f32.gmra.mrb[0].mxu0 %v1171
      %v1302 = vpop.f32.mrb[0].mxu0
      %v1303 = vadd.f32 %v1146, %v1302
      %v1304 = vpop.f32.mrb[0].mxu0
      %1305 = vmatprep.mubr.f32.mxu0 0.0
      %1306 = vmatmul.mubr.f32.gmra.mrb[0].mxu0 %v1174
      %v1307 = vpop.f32.mrb[0].mxu0
      %v1308 = vadd.f32 %v1146, %v1307
      %v1309 = vpop.f32.mrb[0].mxu0
      %1310 = vmatprep.mubr.f32.mxu0 0.0
      %1311 = vmatmul.mubr.f32.gmra.mrb[0].mxu0 %v1177
      %v1312 = vpop.f32.mrb[0].mxu0
      %v1313 = vadd.f32 %v1146, %v1312
      %v1314 = vpop.f32.mrb[0].mxu0
      %1315 = vmatprep.mubr.f32.mxu0 0.0
      %1316 = vmatmul.mubr.f32.gmra.mrb[0].mxu0 %v1180
      %v1317 = vpop.f32.mrb[0].mxu0
      %v1318 = vadd.f32 %v1146, %v1317
      %v1319 = vpop.f32.mrb[0].mxu0
      %1320 = vmatprep.mubr.f32.mxu0 0.0
      %1321 = vmatmul.mubr.f32.gmra.mrb[0].mxu0 %v1183
      %v1322 = vpop.f32.mrb[0].mxu0
      %v1323 = vadd.f32 %v1146, %v1322
      %v1324 = vpop.f32.mrb[0].mxu0
      %1325 = vmatprep.mubr.f32.mxu0 0.0
      %1326 = vmatmul.mubr.f32.gmra.mrb[0].mxu0 %v1186
      %v1327 = vpop.f32.mrb[0].mxu0
      %v1328 = vadd.f32 %v1146, %v1327
      %v1329 = vpop.f32.mrb[0].mxu0
      %1330 = vmatprep.mubr.f32.mxu0 0.0
      %1331 = vmatmul.mubr.f32.gmra.mrb[0].mxu0 %v1189
      %v1332 = vpop.f32.mrb[0].mxu0
      %v1333 = vadd.f32 %v1146, %v1332
      %v1334 = vpop.f32.mrb[0].mxu0
      %1335 = vmatprep.mubr.f32.mxu0 0.0
      %1336 = vmatmul.mubr.f32.gmra.mrb[0].mxu0 %v1192
      %v1337 = vpop.f32.mrb[0].mxu0
      %v1338 = vadd.f32 %v1146, %v1337
      %v1339 = vpop.f32.mrb[0].mxu0
      %1340 = vmatprep.mubr.f32.mxu0 0.0
      %1341 = vmatmul.mubr.f32.gmra.mrb[0].mxu0 %v1195
      %v1342 = vpop.f32.mrb[0].mxu0
      %v1343 = vadd.f32 %v1146, %v1342
      %v1344 = vpop.f32.mrb[0].mxu0
      %1345 = vdwg.mxu0
      %vm1346 = vcmp.ge.f32.partialorder %v1268, 0.0
      %vm1347 = vcmp.ge.f32.partialorder %v1273, 0.0
      %vm1348 = vcmp.ge.f32.partialorder %v1278, 0.0
      %vm1349 = vcmp.ge.f32.partialorder %v1283, 0.0
      %vm1350 = vcmp.ge.f32.partialorder %v1288, 0.0
      %vm1351 = vcmp.ge.f32.partialorder %v1293, 0.0
      %vm1352 = vcmp.ge.f32.partialorder %v1298, 0.0
      %vm1353 = vcmp.ge.f32.partialorder %v1303, 0.0
      %vm1354 = vcmp.ge.f32.partialorder %v1308, 0.0
      %vm1355 = vcmp.ge.f32.partialorder %v1313, 0.0
      %vm1356 = vcmp.ge.f32.partialorder %v1318, 0.0
      %vm1357 = vcmp.ge.f32.partialorder %v1323, 0.0
      %vm1358 = vcmp.ge.f32.partialorder %v1328, 0.0
      %vm1359 = vcmp.ge.f32.partialorder %v1333, 0.0
      %vm1360 = vcmp.ge.f32.partialorder %v1338, 0.0
      %vm1361 = vcmp.ge.f32.partialorder %v1343, 0.0
      %v1362 = vld [vmem:[%s3] sm:$0x1]
      %v1364 = vlaneseq
      %v1365 = vshrl.u32 %v1364, 7
      %v1366 = vsub.s32 0, %v1365
      %v1367 = vrot.slane %v1362, %v1366
      %v1369 = vmul.f32 %v1367, %v1268
      %v1370 = vmul.f32 %v1367, %v1273
      %v1371 = vmul.f32 %v1367, %v1278
      %v1372 = vmul.f32 %v1367, %v1283
      %v1373 = vmul.f32 %v1367, %v1288
      %v1374 = vmul.f32 %v1367, %v1293
      %v1375 = vmul.f32 %v1367, %v1298
      %v1376 = vmul.f32 %v1367, %v1303
      %v1377 = vmul.f32 %v1367, %v1308
      %v1378 = vmul.f32 %v1367, %v1313
      %v1379 = vmul.f32 %v1367, %v1318
      %v1380 = vmul.f32 %v1367, %v1323
      %v1381 = vmul.f32 %v1367, %v1328
      %v1382 = vmul.f32 %v1367, %v1333
      %v1383 = vmul.f32 %v1367, %v1338
      %v1384 = vmul.f32 %v1367, %v1343
      %v1385 = vsel %vm1346, %v1268, %v1369
      %v1386 = vsel %vm1347, %v1273, %v1370
      %v1387 = vsel %vm1348, %v1278, %v1371
      %v1388 = vsel %vm1349, %v1283, %v1372
      %v1389 = vsel %vm1350, %v1288, %v1373
      %v1390 = vsel %vm1351, %v1293, %v1374
      %v1391 = vsel %vm1352, %v1298, %v1375
      %v1392 = vsel %vm1353, %v1303, %v1376
      %v1393 = vsel %vm1354, %v1308, %v1377
      %v1394 = vsel %vm1355, %v1313, %v1378
      %v1395 = vsel %vm1356, %v1318, %v1379
      %v1396 = vsel %vm1357, %v1323, %v1380
      %v1397 = vsel %vm1358, %v1328, %v1381
      %v1398 = vsel %vm1359, %v1333, %v1382
      %v1399 = vsel %vm1360, %v1338, %v1383
      %v1400 = vsel %vm1361, %v1343, %v1384
      %1401 = vst.msk [vmem:[%s219] sm:$0xff] %vm1051, %v1385
      %1402 = vst.msk [vmem:[%s219 + $0x8] sm:$0xff] %vm1051, %v1386
      %1403 = vst.msk [vmem:[%s219 + $0x10] sm:$0xff] %vm1051, %v1387
      %1404 = vst.msk [vmem:[%s219 + $0x18] sm:$0xff] %vm1051, %v1388
      %1405 = vst.msk [vmem:[%s219 + $0x20] sm:$0xff] %vm1051, %v1389
      %1406 = vst.msk [vmem:[%s219 + $0x28] sm:$0xff] %vm1051, %v1390
      %1407 = vst.msk [vmem:[%s219 + $0x30] sm:$0xff] %vm1051, %v1391
      %1408 = vst.msk [vmem:[%s219 + $0x38] sm:$0xff] %vm1051, %v1392
      %1409 = vst.msk [vmem:[%s219 + $0x40] sm:$0xff] %vm1051, %v1393
      %1410 = vst.msk [vmem:[%s219 + $0x48] sm:$0xff] %vm1051, %v1394
      %1411 = vst.msk [vmem:[%s219 + $0x50] sm:$0xff] %vm1051, %v1395
      %1412 = vst.msk [vmem:[%s219 + $0x58] sm:$0xff] %vm1051, %v1396
      %1413 = vst.msk [vmem:[%s219 + $0x60] sm:$0xff] %vm1051, %v1397
      %1414 = vst.msk [vmem:[%s219 + $0x68] sm:$0xff] %vm1051, %v1398
      %1415 = vst.msk [vmem:[%s219 + $0x70] sm:$0xff] %vm1051, %v1399
      %1416 = vst.msk [vmem:[%s219 + $0x78] sm:$0xff] %vm1051, %v1400
      %s1417 = smul.u32 16, %s20
      %p1418 = scmp.lt.s32.totalorder %s19, 1
      %s1419 = scalar_select %p1418, %s19, 1
      %p1420 = scmp.lt.s32.totalorder %s1417, 31
      %s1421 = scalar_select %p1420, %s1417, 31
      %s1422 = smul.addr %s1419, 32
      %s1423 = sadd.s32 %s1421, %s1422
      %s1424 = smul.addr %s1423, 8
      %s1425 = scalar_lea.vmem %s4, %s1424
      // Predicated region
      $region37: #{upsampling_block.1} parent=35 // pred_check
        %p1426 = pneg %p136
      $region38: #{upsampling_block.1} parent=35 // pred_check_branch
        %1428 = sbr.rel (%p1426) target = $region40
      $region39: #{upsampling_block.1} parent=35 // pred_region
        %s1429 = smul.u32 16, %s20
      $region40: #{upsampling_block.1} parent=35 // pred_fallthru
        _
    $region36: #{upsampling_block.1} parent=5 // pred_fallthru
      _
    %p1430 = scmp.le.s32.totalorder 2, %s10
    // Predicated region
    $region41: #{upsampling_block.1} parent=5 // pred_check
      %p1431 = pneg %p1430
    $region42: #{upsampling_block.1} parent=5 // pred_check_branch
      %1433 = sbr.rel (%p1431) target = $region44
    $region43: #{upsampling_block.1} parent=5 // pred_region
      %s1434 = ssub.s32 %s10, 2
      // Predicated region
      $region45: #{upsampling_block.1} parent=43 // pred_check
        %p1435 = pneg %p142
      $region46: #{upsampling_block.1} parent=43 // pred_check_branch
        %1437 = sbr.rel (%p1435) target = $region48
      $region47: #{upsampling_block.1} parent=43 // pred_region
        %s1438 = smul.u32 16, %s22
        %p1439 = scmp.lt.s32.totalorder %s21, 1
        %s1440 = scalar_select %p1439, %s21, 1
        %p1441 = scmp.lt.s32.totalorder %s1438, 31
        %s1442 = scalar_select %p1441, %s1438, 31
        %s1443 = smul.addr %s1440, 32
        %s1444 = sadd.s32 %s1442, %s1443
        %s1445 = smul.addr %s1444, 8
        %s1446 = scalar_lea.vmem %s4, %s1445
      $region48: #{upsampling_block.1} parent=43 // pred_fallthru
        _
    $region44: #{upsampling_block.1} parent=5 // pred_fallthru
      _
  $region6: #{upsampling_block.1} parent=0 // loop_footer
    %s14 = sadd.s32 1, %s10
  $region7: #{upsampling_block.1} parent=0 // loop_footer_branch
    %9 = sbr.rel target = $region3
  $region8: #{upsampling_block.1} parent=0 // loop_exit
    _

</llo_original>
